<compile_context>
chip_gen: v5e
topology: v5e:2x2
jax: 0.10.0
libtpu: 0.0.40
codegen_flags: <defaults>
</compile_context>

<pallas_src>
import math

import jax
import jax.numpy as jnp
from jax.experimental import pallas as pl
from jax.experimental.pallas import tpu as pltpu


def make_sinusoidal_pe(d_model: int, max_len: int = 5000) -> jnp.ndarray:
    """Deterministic buffer init, identical math to the PyTorch __init__."""
    position = jnp.arange(max_len, dtype=jnp.float32)[:, None]           # [max_len, 1]
    div_term = jnp.exp(
        jnp.arange(0, d_model, 2, dtype=jnp.float32)
        * (-math.log(10000.0) / d_model)
    )                                                                     # [d_model//2]
    angles = position * div_term                                          # [max_len, d_model//2]
    pe = jnp.zeros((max_len, d_model), dtype=jnp.float32)
    pe = pe.at[:, 0::2].set(jnp.sin(angles))
    pe = pe.at[:, 1::2].set(jnp.cos(angles))
    return pe                                                             # [max_len, d_model]


def _pos_enc_kernel(x_ref, pe_ref, o_ref):
    # x_ref / o_ref: (bb, ts, d) tile; pe_ref: (ts, d) tile shared across batch.
    # Cast pe in-kernel (no wrapper-side astype copy); broadcast along the
    # leading (non-sublane/lane) dim is cheap VPU work.
    o_ref[...] = x_ref[...] + pe_ref[...].astype(x_ref.dtype)[None]


def _vmem_capacity_bytes() -> int:
    try:
        return int(pltpu.get_tpu_info().vmem_capacity_bytes)
    except Exception:
        return 64 << 20   # conservative (v7x-sized) fallback


def _target_block_bytes(vmem_cap: int) -> int:
    # x/pe/out double-buffered => ~6 resident blocks; keep them well under VMEM.
    # 128 MiB (v5e/v6e) -> 8 MiB blocks; 64 MiB (v7x) -> 4 MiB blocks.
    return int(min(8 << 20, max(1 << 20, vmem_cap // 16)))


def _sublane_quantum(dtype) -> int:
    # Packed-dtype sublane quantum: 8 rows f32, 16 bf16, 32 int8/fp8.
    return max(8, 32 // jnp.dtype(dtype).itemsize)


def _aligned_divisors(n: int, q: int):
    return [c for c in range(q, n + 1, q) if n % c == 0]


def positional_encoding(
    x: jnp.ndarray,
    pe: jnp.ndarray,
    *,
    ts: int | None = None,
    bb: int | None = None,
    donate_x: bool = False,
) -> jnp.ndarray:
    """x: [B, S, D], pe: [max_len, D] -> [B, S, D] (dtype follows x)."""
    b, s, d = x.shape
    max_len, d_pe = pe.shape
    assert s <= max_len, "seq_len exceeds max_len of the positional-encoding buffer"
    assert d == d_pe, "d_model mismatch between x and pe"

    q = _sublane_quantum(x.dtype)
    vmem_cap = _vmem_capacity_bytes()
    target = _target_block_bytes(vmem_cap)
    row_bytes = d * x.dtype.itemsize

    # --- sequence tile: largest quantum-aligned divisor of s under the byte target.
    divs = _aligned_divisors(s, q) if s % q == 0 else []
    if ts is not None:
        ts = max(1, min(int(ts), s))
        cands = [c for c in divs if c <= ts]
        ts = max(cands) if cands else (min(divs) if divs else s)
    else:
        rows_target = max(q, target // max(row_bytes, 1))
        cands = [c for c in divs if c <= rows_target]
        ts = max(cands) if cands else (min(divs) if divs else s)

    # --- batch fold: largest divisor of b whose folded tile stays under the target.
    tile_bytes = ts * row_bytes
    if bb is not None:
        bb = max(1, min(int(bb), b))
        while b % bb != 0:
            bb -= 1
    else:
        bb = 1
        for c in range(1, b + 1):
            if b % c == 0 and c * tile_bytes <= target:
                bb = c

    # v7x has 2 TensorCores sharing the parallel grid: guarantee >= 2 grid steps.
    if (s // ts == 1) and (b // bb == 1):
        if b % 2 == 0 and b >= 2:
            bb = b // 2
        elif s % 2 == 0 and (s // 2) % q == 0:
            ts = s // 2

    n_seq = s // ts
    n_bat = b // bb
    grid = (n_seq, n_bat)   # batch innermost -> pe tile DMA reused across batch steps

    # Pass the full [max_len, d] buffer (no wrapper slice/astype copy); the
    # index_map only touches rows [0, n_seq*ts) == [0, s).
    pe_in = pe
    if ts == s and s % 8 != 0:
        # Ragged-seq edge case: block dim must equal the full array dim, so
        # slice once here (tiny copy, edge case only).
        pe_in = pe[:s]

    x_blk = bb * ts * d * x.dtype.itemsize
    pe_blk = ts * d * pe_in.dtype.itemsize
    working = 2 * (2 * x_blk + pe_blk)          # double-buffered x, out, pe
    vmem_limit = int(min(max(working + (8 << 20), 32 << 20), vmem_cap - (8 << 20)))

    return pl.pallas_call(
        _pos_enc_kernel,
        out_shape=jax.ShapeDtypeStruct((b, s, d), x.dtype),
        grid_spec=pltpu.PrefetchScalarGridSpec(
            num_scalar_prefetch=0,
            grid=grid,
            in_specs=[
                # x: (bb, ts, d) tile of bb batch elements
                pl.BlockSpec((bb, ts, d), lambda j, i: (i, j, 0)),
                # pe: (ts, d) tile, index depends only on the seq tile
                pl.BlockSpec((ts, d), lambda j, i: (j, 0)),
            ],
            out_specs=pl.BlockSpec((bb, ts, d), lambda j, i: (i, j, 0)),
        ),
        compiler_params=pltpu.CompilerParams(
            dimension_semantics=("parallel", "parallel"),
            vmem_limit_bytes=vmem_limit,
        ),
        input_output_aliases=({0: 0} if donate_x else {}),
    )(x, pe_in)


if __name__ == "__main__":
    # Small, lane-dense test shapes: D = 128 (multiple of 128), S = 256 so the
    # multi-tile and folded-batch paths can both be exercised.
    B, S, D = 2, 256, 128
    MAX_LEN = 512  # semantics identical to 5000 since S <= MAX_LEN

    key = jax.random.PRNGKey(0)
    x = jax.random.normal(key, (B, S, D), dtype=jnp.float32)

    pe = make_sinusoidal_pe(D, MAX_LEN)

    # Auto path (gen-gated tile target; grid split so >=2 parallel steps).
    out = jax.block_until_ready(positional_encoding(x, pe))
    ref = x + pe[None, :S, :]
    assert out.shape == (B, S, D)
    assert jnp.allclose(out, ref, atol=1e-6, rtol=1e-6)

    # Explicit multi-seq-tile + folded-batch path: 2 seq tiles x 1 batch tile.
    out2 = jax.block_until_ready(positional_encoding(x, pe, ts=128, bb=2))
    assert jnp.allclose(out2, ref, atol=1e-6, rtol=1e-6)

    print("KERNEL_OK")
</pallas_src>

<mosaic_0001>
module attributes {stable_mosaic.version = 11 : i64} {
  func.func @_pos_enc_kernel(%arg0: i32, %arg1: i32, %arg2: memref<1x256x128xf32, #tpu.memory_space<vmem>>, %arg3: memref<256x128xf32, #tpu.memory_space<vmem>>, %arg4: memref<1x256x128xf32, #tpu.memory_space<vmem>>) attributes {dimension_semantics = [#tpu.dimension_semantics<parallel>, #tpu.dimension_semantics<parallel>], iteration_bounds = array<i64: 1, 2>, scalar_prefetch = 0 : i64, scratch_operands = 0 : i64, tpu.core_type = #tpu.core_type<tc>, window_params = [{transform_indices = @transform_0, window_bounds = array<i64: 1, 256, 128>}, {transform_indices = @transform_1, window_bounds = array<i64: 256, 128>}, {transform_indices = @transform_2, window_bounds = array<i64: 1, 256, 128>}]} {
    %c0 = arith.constant 0 : index
    %c0_0 = arith.constant 0 : index
    %c0_1 = arith.constant 0 : index
    %0 = vector.load %arg2[%c0, %c0_0, %c0_1] : memref<1x256x128xf32, #tpu.memory_space<vmem>>, vector<1x256x128xf32>
    %c0_2 = arith.constant 0 : index
    %c0_3 = arith.constant 0 : index
    %1 = vector.load %arg3[%c0_2, %c0_3] : memref<256x128xf32, #tpu.memory_space<vmem>>, vector<256x128xf32>
    %2 = vector.shape_cast %1 : vector<256x128xf32> to vector<1x256x128xf32>
    %3 = arith.addf %0, %2 : vector<1x256x128xf32>
    %c0_4 = arith.constant 0 : index
    %c0_5 = arith.constant 0 : index
    %c0_6 = arith.constant 0 : index
    %4 = vector.load %arg4[%c0_4, %c0_5, %c0_6] : memref<1x256x128xf32, #tpu.memory_space<vmem>>, vector<1x256x128xf32>
    tpu.vector_store %arg4[%c0_4, %c0_5, %c0_6], %3 {strides = array<i32>} : memref<1x256x128xf32, #tpu.memory_space<vmem>>, vector<1x256x128xf32>,
    return
  }
  func.func @transform_0(%arg0: i32, %arg1: i32) -> (i32, i32, i32) {
    %c0_i32 = arith.constant 0 : i32
    %c0_i32_0 = arith.constant 0 : i32
    return %arg1, %arg0, %c0_i32 : i32, i32, i32
  }
  func.func @transform_1(%arg0: i32, %arg1: i32) -> (i32, i32) {
    %c0_i32 = arith.constant 0 : i32
    %c0_i32_0 = arith.constant 0 : i32
    return %arg0, %c0_i32 : i32, i32
  }
  func.func @transform_2(%arg0: i32, %arg1: i32) -> (i32, i32, i32) {
    %c0_i32 = arith.constant 0 : i32
    %c0_i32_0 = arith.constant 0 : i32
    return %arg1, %arg0, %c0_i32 : i32, i32, i32
  }
}

</mosaic_0001>

<llo_original>
// kernel: tpu_custom_call.1
$region0: #{tpu_custom_call.1}
  #allocation0 [shape = 'u32[]', space=smem, size = 0x4, offset = 0x4, fixed_abs, tag = 'smem constant byte address 0x4 - core index']
  #allocation1 [shape = 'u32[72,128]{1,0:T(1,128)}', space=vmem, size = 0x9000, scoped, tag = 'internal scratch']
  %s0 = inlined_call_operand.hbm [shape: f32[2,256,128], index: 0, kind: input, shape index: {}]
  %s1 = inlined_call_operand.hbm [shape: f32[512,128], index: 1, kind: input, shape index: {}]
  %s2 = inlined_call_operand.hbm [shape: f32[2,256,128], index: 2, kind: output, shape index: {}]
  %s3 = sld [smem:[#allocation0]]
  $region49: #{tpu_custom_call.1} parent=0
    _
  %s5 = ssub.s32 1, %s3
  %s6 = scalar_select 0, %s5, %s3
  $region1: #{tpu_custom_call.1} parent=0
    #allocation2 [shape = 'u8[262144]{0}', space=vmem, size = 0x40000, scoped, tag = 'input window, operand 0']
    #allocation3 [shape = 's32[2]{0}', space=sflag, size = 0x8, scoped, tag = 'scoped memory for tpu_custom_call.1']
    #allocation4 [shape = 's32[2]{0}', space=sflag, size = 0x8, scoped, tag = 'scoped memory for tpu_custom_call.1']
    #allocation5 [shape = 'u8[131072]{0}', space=vmem, size = 0x20000, scoped, tag = 'input window, operand 1, single buffered']
    #allocation6 [shape = 's32[1]{0}', space=sflag, size = 0x4, scoped, tag = 'scoped memory for tpu_custom_call.1']
    #allocation7 [shape = 'u8[262144]{0}', space=vmem, size = 0x40000, scoped, tag = 'output window, operand 0']
    %7 = vsyncpa [#allocation3], 0
    %s8 = scalar_lea.sflag [#allocation3], 1
    %9 = vsyncpa %s8, 0
    %10 = vsyncpa [#allocation6], 0
    %11 = vsyncpa [#allocation4], 0
    %s12 = scalar_lea.sflag [#allocation4], 1
    %13 = vsyncpa %s12, 0
    loop: start=0, step=1, limit=4
    $region2: #{tpu_custom_call.1} parent=1 // loop_pre_header
      _
    $region3: #{tpu_custom_call.1} parent=1 // loop_header
      %s15 = sphi 0, %s19
      %p16 = scmp.ge.s32.totalorder %s15, 4
      %s22 = sphi 0, %s34
      %s23 = sphi 0, %s30
      %s24 = sphi 0, %s22
      %s25 = sphi 0, %s23
      %s26 = sphi 0, %s24
      %s27 = sphi 0, %s25
      %s39 = sphi 0, %s41
      %s42 = sphi 0, %s39
      %s43 = sphi 0, %s42
      %s59 = sphi 0, %s43
      %s65 = sphi 0, %s67
      %s68 = sphi 0, %s65
      %s69 = sphi 0, %s68
      %s85 = sphi 0, %s69
      %s93 = sphi 0, %s95
      %s96 = sphi 0, %s93
      %s97 = sphi 0, %s96
      %s113 = sphi 0, %s97
    $region4: #{tpu_custom_call.1} parent=1 // loop_header_branch
      %18 = sbr.rel (%p16) target = $region8
    $region5: #{tpu_custom_call.1} parent=1 // loop_body
      %s20 = ssub.s32 %s15, 1
      %s21 = ssub.s32 %s15, 2
      %s28 = sadd.s32 1, %s23
      %p29 = scmp.ge.s32.totalorder %s28, 2
      %s30 = scalar_select %p29, 0, %s28
      %s31 = sadd.s32 1, %s22
      %s32 = scalar_select %p29, %s31, %s22
      %p33 = scmp.ge.s32.totalorder %s32, 1
      %s34 = scalar_select %p33, 0, %s32
      %s35 = ssub.s32 %s23, %s30
      %s36 = ssub.s32 %s22, %s34
      %s37 = sor.u32 %s35, %s36
      %p38 = scmp.eq.s32.totalorder %s37, 0
      %s40 = sadd.s32 %s39, 1
      %s41 = scalar_select %p38, %s39, %s40
      %p44 = pneg %p38
      %p45 = scmp.eq.s32.totalorder %s15, 1
      %p46 = por %p44, %p45
      %p47 = scmp.ne.s32.totalorder %s39, %s42
      %p48 = scmp.eq.s32.totalorder %s15, 0
      %p49 = por %p47, %p48
      %p50 = scmp.ne.s32.totalorder %s39, %s42
      %p51 = scmp.eq.s32.totalorder %s20, 1
      %p52 = por %p50, %p51
      %p53 = scmp.ne.s32.totalorder %s42, %s43
      %p54 = scmp.eq.s32.totalorder %s20, 0
      %p55 = por %p53, %p54
      %p56 = scmp.ne.s32.totalorder %s42, %s43
      %p57 = scmp.eq.s32.totalorder %s21, 1
      %p58 = por %p56, %p57
      %p60 = scmp.ne.s32.totalorder %s43, %s59
      %p61 = scmp.eq.s32.totalorder %s21, 0
      %p62 = por %p60, %p61
      %s63 = ssub.s32 %s22, %s34
      %p64 = scmp.eq.s32.totalorder %s63, 0
      %s66 = sadd.s32 %s65, 1
      %s67 = scalar_select %p64, %s65, %s66
      %p70 = pneg %p64
      %p71 = scmp.eq.s32.totalorder %s15, 1
      %p72 = por %p70, %p71
      %p73 = scmp.ne.s32.totalorder %s65, %s68
      %p74 = scmp.eq.s32.totalorder %s15, 0
      %p75 = por %p73, %p74
      %p76 = scmp.ne.s32.totalorder %s65, %s68
      %p77 = scmp.eq.s32.totalorder %s20, 1
      %p78 = por %p76, %p77
      %p79 = scmp.ne.s32.totalorder %s68, %s69
      %p80 = scmp.eq.s32.totalorder %s20, 0
      %p81 = por %p79, %p80
      %p82 = scmp.ne.s32.totalorder %s68, %s69
      %p83 = scmp.eq.s32.totalorder %s21, 1
      %p84 = por %p82, %p83
      %p86 = scmp.ne.s32.totalorder %s69, %s85
      %p87 = scmp.eq.s32.totalorder %s21, 0
      %p88 = por %p86, %p87
      %s89 = ssub.s32 %s23, %s30
      %s90 = ssub.s32 %s22, %s34
      %s91 = sor.u32 %s89, %s90
      %p92 = scmp.eq.s32.totalorder %s91, 0
      %s94 = sadd.s32 %s93, 1
      %s95 = scalar_select %p92, %s93, %s94
      %p98 = pneg %p92
      %p99 = scmp.eq.s32.totalorder %s15, 1
      %p100 = por %p98, %p99
      %p101 = scmp.ne.s32.totalorder %s93, %s96
      %p102 = scmp.eq.s32.totalorder %s15, 0
      %p103 = por %p101, %p102
      %p104 = scmp.ne.s32.totalorder %s93, %s96
      %p105 = scmp.eq.s32.totalorder %s20, 1
      %p106 = por %p104, %p105
      %p107 = scmp.ne.s32.totalorder %s96, %s97
      %p108 = scmp.eq.s32.totalorder %s20, 0
      %p109 = por %p107, %p108
      %p110 = scmp.ne.s32.totalorder %s96, %s97
      %p111 = scmp.eq.s32.totalorder %s21, 1
      %p112 = por %p110, %p111
      %p114 = scmp.ne.s32.totalorder %s97, %s113
      %p115 = scmp.eq.s32.totalorder %s21, 0
      %p116 = por %p114, %p115
      %p117 = scmp.le.s32.totalorder 1, %s15
      %p118 = scmp.lt.s32.totalorder %s15, 3
      %p119 = pnand %p117, %p118
      %p120 = pneg %p119
      // Predicated region
      $region9: #{tpu_custom_call.1} parent=5 // pred_check
        _
      $region10: #{tpu_custom_call.1} parent=5 // pred_check_branch
        %122 = sbr.rel (%p119) target = $region12
      $region11: #{tpu_custom_call.1} parent=5 // pred_region
        %s123 = ssub.s32 %s15, 1
        // Predicated region
        $region13: #{tpu_custom_call.1} parent=11 // pred_check
          %p124 = pneg %p81
        $region14: #{tpu_custom_call.1} parent=11 // pred_check_branch
          %126 = sbr.rel (%p124) target = $region16
        $region15: #{tpu_custom_call.1} parent=11 // pred_region
          %s127 = smul.u32 32, %s24
          %129 = vsyncadd [#allocation6], 0
          %s130 = smul.addr %s127, 8
          %s131 = scalar_lea.hbm %s1, %s130
          %s132 = sshll.u32 %s131, 4
          %s133 = int_to_ptr.hbm [resolvable:$true] %s132
          %s134 = sshll.u32 [#allocation5], 4
          %s135 = int_to_ptr.vmem [resolvable:$true] %s134
          %140 = dma.hbm_to_vmem [thread:$0]  %s133, 4096, %s135, [#allocation6], 128, 128, 8
        $region16: #{tpu_custom_call.1} parent=11 // pred_fallthru
          _
      $region12: #{tpu_custom_call.1} parent=5 // pred_fallthru
        _
      %p141 = scmp.lt.s32.totalorder %s15, 2
      // Predicated region
      $region17: #{tpu_custom_call.1} parent=5 // pred_check
        %p142 = pneg %p141
      $region18: #{tpu_custom_call.1} parent=5 // pred_check_branch
        %144 = sbr.rel (%p142) target = $region20
      $region19: #{tpu_custom_call.1} parent=5 // pred_region
        // Predicated region
        $region21: #{tpu_custom_call.1} parent=19 // pred_check
          %p145 = pneg %p49
        $region22: #{tpu_custom_call.1} parent=19 // pred_check_branch
          %147 = sbr.rel (%p145) target = $region24
        $region23: #{tpu_custom_call.1} parent=19 // pred_region
          %s148 = sand.u32 %s39, 1
          %s149 = scalar_lea.sflag [#allocation3], %s148
          %s150 = sand.u32 %s39, 1
          %s151 = smul.addr %s150, 256
          %s152 = scalar_lea.vmem [#allocation2], %s151
          %s153 = smul.u32 32, %s22
          %155 = vsyncadd %s149, 0
          %s156 = smul.addr %s23, 32
          %s157 = sadd.s32 %s153, %s156
          %s158 = smul.addr %s157, 8
          %s159 = scalar_lea.hbm %s0, %s158
          %s160 = sshll.u32 %s159, 4
          %s161 = int_to_ptr.hbm [resolvable:$true] %s160
          %s162 = sshll.u32 %s152, 4
          %s163 = int_to_ptr.vmem [resolvable:$true] %s162
          %168 = dma.hbm_to_vmem [thread:$0]  %s161, 4096, %s163, %s149, 128, 128, 8
        $region24: #{tpu_custom_call.1} parent=19 // pred_fallthru
          _
      $region20: #{tpu_custom_call.1} parent=5 // pred_fallthru
        _
      %p169 = scmp.le.s32.totalorder 1, %s15
      %p170 = scmp.lt.s32.totalorder %s15, 3
      %p171 = pnand %p169, %p170
      %p172 = pneg %p171
      // Predicated region
      $region25: #{tpu_custom_call.1} parent=5 // pred_check
        _
      $region26: #{tpu_custom_call.1} parent=5 // pred_check_branch
        %174 = sbr.rel (%p171) target = $region28
      $region27: #{tpu_custom_call.1} parent=5 // pred_region
        %s175 = ssub.s32 %s15, 1
        %s176 = sand.u32 %s42, 1
        %s177 = scalar_lea.sflag [#allocation3], %s176
        %s178 = sand.u32 %s42, 1
        %s179 = smul.addr %s178, 256
        %s180 = scalar_lea.vmem [#allocation2], %s179
        // Predicated region
        $region29: #{tpu_custom_call.1} parent=27 // pred_check
          %p181 = pneg %p55
        $region30: #{tpu_custom_call.1} parent=27 // pred_check_branch
          %183 = sbr.rel (%p181) target = $region32
        $region31: #{tpu_custom_call.1} parent=27 // pred_region
          %185 = dma.done %s177, 4096
        $region32: #{tpu_custom_call.1} parent=27 // pred_fallthru
          _
        // Predicated region
        $region33: #{tpu_custom_call.1} parent=27 // pred_check
          %p186 = pneg %p81
        $region34: #{tpu_custom_call.1} parent=27 // pred_check_branch
          %188 = sbr.rel (%p186) target = $region36
        $region35: #{tpu_custom_call.1} parent=27 // pred_region
          %190 = dma.done [#allocation6], 4096
        $region36: #{tpu_custom_call.1} parent=27 // pred_fallthru
          _
        %s191 = sand.u32 %s42, 1
        %s192 = scalar_lea.sflag [#allocation3], %s191
        %s193 = sand.u32 %s42, 1
        %s194 = smul.addr %s193, 256
        %s195 = scalar_lea.vmem [#allocation2], %s194
        %p196 = pneg %p55
        %p197 = pneg %p52
        %p198 = pneg %p81
        %p199 = pneg %p78
        %p200 = pneg %p109
        %p201 = pneg %p106
        %s202 = sand.u32 %s96, 1
        %s203 = scalar_lea.sflag [#allocation4], %s202
        %s204 = sand.u32 %s96, 1
        %s205 = smul.addr %s204, 256
        %s206 = scalar_lea.vmem [#allocation7], %s205
        %s207 = smul.u32 32, %s24
        %s208 = smul.u32 32, %s24
        %s209 = smul.u32 32, %s24
        %v210 = vld [vmem:[%s180] sm:$0xff]
        %v211 = vld [vmem:[%s180 + $0x8] sm:$0xff]
        %v212 = vld [vmem:[%s180 + $0x10] sm:$0xff]
        %v213 = vld [vmem:[%s180 + $0x18] sm:$0xff]
        %v214 = vld [vmem:[%s180 + $0x20] sm:$0xff]
        %v215 = vld [vmem:[%s180 + $0x28] sm:$0xff]
        %v216 = vld [vmem:[%s180 + $0x30] sm:$0xff]
        %v217 = vld [vmem:[%s180 + $0x38] sm:$0xff]
        %v218 = vld [vmem:[%s180 + $0x40] sm:$0xff]
        %v219 = vld [vmem:[%s180 + $0x48] sm:$0xff]
        %v220 = vld [vmem:[%s180 + $0x50] sm:$0xff]
        %v221 = vld [vmem:[%s180 + $0x58] sm:$0xff]
        %v222 = vld [vmem:[%s180 + $0x60] sm:$0xff]
        %v223 = vld [vmem:[%s180 + $0x68] sm:$0xff]
        %v224 = vld [vmem:[%s180 + $0x70] sm:$0xff]
        %v225 = vld [vmem:[%s180 + $0x78] sm:$0xff]
        %v226 = vld [vmem:[%s180 + $0x80] sm:$0xff]
        %v227 = vld [vmem:[%s180 + $0x88] sm:$0xff]
        %v228 = vld [vmem:[%s180 + $0x90] sm:$0xff]
        %v229 = vld [vmem:[%s180 + $0x98] sm:$0xff]
        %v230 = vld [vmem:[%s180 + $0xa0] sm:$0xff]
        %v231 = vld [vmem:[%s180 + $0xa8] sm:$0xff]
        %v232 = vld [vmem:[%s180 + $0xb0] sm:$0xff]
        %v233 = vld [vmem:[%s180 + $0xb8] sm:$0xff]
        %v234 = vld [vmem:[%s180 + $0xc0] sm:$0xff]
        %v235 = vld [vmem:[%s180 + $0xc8] sm:$0xff]
        %v236 = vld [vmem:[%s180 + $0xd0] sm:$0xff]
        %v237 = vld [vmem:[%s180 + $0xd8] sm:$0xff]
        %v238 = vld [vmem:[%s180 + $0xe0] sm:$0xff]
        %v239 = vld [vmem:[%s180 + $0xe8] sm:$0xff]
        %v240 = vld [vmem:[%s180 + $0xf0] sm:$0xff]
        %v241 = vld [vmem:[%s180 + $0xf8] sm:$0xff]
        %v242 = vld [vmem:[#allocation5] sm:$0xff]
        %v243 = vld [vmem:[#allocation5 + $0x8] sm:$0xff]
        %v244 = vld [vmem:[#allocation5 + $0x10] sm:$0xff]
        %v245 = vld [vmem:[#allocation5 + $0x18] sm:$0xff]
        %v246 = vld [vmem:[#allocation5 + $0x20] sm:$0xff]
        %v247 = vld [vmem:[#allocation5 + $0x28] sm:$0xff]
        %v248 = vld [vmem:[#allocation5 + $0x30] sm:$0xff]
        %v249 = vld [vmem:[#allocation5 + $0x38] sm:$0xff]
        %v250 = vld [vmem:[#allocation5 + $0x40] sm:$0xff]
        %v251 = vld [vmem:[#allocation5 + $0x48] sm:$0xff]
        %v252 = vld [vmem:[#allocation5 + $0x50] sm:$0xff]
        %v253 = vld [vmem:[#allocation5 + $0x58] sm:$0xff]
        %v254 = vld [vmem:[#allocation5 + $0x60] sm:$0xff]
        %v255 = vld [vmem:[#allocation5 + $0x68] sm:$0xff]
        %v256 = vld [vmem:[#allocation5 + $0x70] sm:$0xff]
        %v257 = vld [vmem:[#allocation5 + $0x78] sm:$0xff]
        %v258 = vld [vmem:[#allocation5 + $0x80] sm:$0xff]
        %v259 = vld [vmem:[#allocation5 + $0x88] sm:$0xff]
        %v260 = vld [vmem:[#allocation5 + $0x90] sm:$0xff]
        %v261 = vld [vmem:[#allocation5 + $0x98] sm:$0xff]
        %v262 = vld [vmem:[#allocation5 + $0xa0] sm:$0xff]
        %v263 = vld [vmem:[#allocation5 + $0xa8] sm:$0xff]
        %v264 = vld [vmem:[#allocation5 + $0xb0] sm:$0xff]
        %v265 = vld [vmem:[#allocation5 + $0xb8] sm:$0xff]
        %v266 = vld [vmem:[#allocation5 + $0xc0] sm:$0xff]
        %v267 = vld [vmem:[#allocation5 + $0xc8] sm:$0xff]
        %v268 = vld [vmem:[#allocation5 + $0xd0] sm:$0xff]
        %v269 = vld [vmem:[#allocation5 + $0xd8] sm:$0xff]
        %v270 = vld [vmem:[#allocation5 + $0xe0] sm:$0xff]
        %v271 = vld [vmem:[#allocation5 + $0xe8] sm:$0xff]
        %v272 = vld [vmem:[#allocation5 + $0xf0] sm:$0xff]
        %v273 = vld [vmem:[#allocation5 + $0xf8] sm:$0xff]
        %v274 = vadd.f32 %v210, %v242
        %v275 = vadd.f32 %v211, %v243
        %v276 = vadd.f32 %v212, %v244
        %v277 = vadd.f32 %v213, %v245
        %v278 = vadd.f32 %v214, %v246
        %v279 = vadd.f32 %v215, %v247
        %v280 = vadd.f32 %v216, %v248
        %v281 = vadd.f32 %v217, %v249
        %v282 = vadd.f32 %v218, %v250
        %v283 = vadd.f32 %v219, %v251
        %v284 = vadd.f32 %v220, %v252
        %v285 = vadd.f32 %v221, %v253
        %v286 = vadd.f32 %v222, %v254
        %v287 = vadd.f32 %v223, %v255
        %v288 = vadd.f32 %v224, %v256
        %v289 = vadd.f32 %v225, %v257
        %v290 = vadd.f32 %v226, %v258
        %v291 = vadd.f32 %v227, %v259
        %v292 = vadd.f32 %v228, %v260
        %v293 = vadd.f32 %v229, %v261
        %v294 = vadd.f32 %v230, %v262
        %v295 = vadd.f32 %v231, %v263
        %v296 = vadd.f32 %v232, %v264
        %v297 = vadd.f32 %v233, %v265
        %v298 = vadd.f32 %v234, %v266
        %v299 = vadd.f32 %v235, %v267
        %v300 = vadd.f32 %v236, %v268
        %v301 = vadd.f32 %v237, %v269
        %v302 = vadd.f32 %v238, %v270
        %v303 = vadd.f32 %v239, %v271
        %v304 = vadd.f32 %v240, %v272
        %v305 = vadd.f32 %v241, %v273
        %306 = vst [vmem:[%s206] sm:$0xff] %v274
        %307 = vst [vmem:[%s206 + $0x8] sm:$0xff] %v275
        %308 = vst [vmem:[%s206 + $0x10] sm:$0xff] %v276
        %309 = vst [vmem:[%s206 + $0x18] sm:$0xff] %v277
        %310 = vst [vmem:[%s206 + $0x20] sm:$0xff] %v278
        %311 = vst [vmem:[%s206 + $0x28] sm:$0xff] %v279
        %312 = vst [vmem:[%s206 + $0x30] sm:$0xff] %v280
        %313 = vst [vmem:[%s206 + $0x38] sm:$0xff] %v281
        %314 = vst [vmem:[%s206 + $0x40] sm:$0xff] %v282
        %315 = vst [vmem:[%s206 + $0x48] sm:$0xff] %v283
        %316 = vst [vmem:[%s206 + $0x50] sm:$0xff] %v284
        %317 = vst [vmem:[%s206 + $0x58] sm:$0xff] %v285
        %318 = vst [vmem:[%s206 + $0x60] sm:$0xff] %v286
        %319 = vst [vmem:[%s206 + $0x68] sm:$0xff] %v287
        %320 = vst [vmem:[%s206 + $0x70] sm:$0xff] %v288
        %321 = vst [vmem:[%s206 + $0x78] sm:$0xff] %v289
        %322 = vst [vmem:[%s206 + $0x80] sm:$0xff] %v290
        %323 = vst [vmem:[%s206 + $0x88] sm:$0xff] %v291
        %324 = vst [vmem:[%s206 + $0x90] sm:$0xff] %v292
        %325 = vst [vmem:[%s206 + $0x98] sm:$0xff] %v293
        %326 = vst [vmem:[%s206 + $0xa0] sm:$0xff] %v294
        %327 = vst [vmem:[%s206 + $0xa8] sm:$0xff] %v295
        %328 = vst [vmem:[%s206 + $0xb0] sm:$0xff] %v296
        %329 = vst [vmem:[%s206 + $0xb8] sm:$0xff] %v297
        %330 = vst [vmem:[%s206 + $0xc0] sm:$0xff] %v298
        %331 = vst [vmem:[%s206 + $0xc8] sm:$0xff] %v299
        %332 = vst [vmem:[%s206 + $0xd0] sm:$0xff] %v300
        %333 = vst [vmem:[%s206 + $0xd8] sm:$0xff] %v301
        %334 = vst [vmem:[%s206 + $0xe0] sm:$0xff] %v302
        %335 = vst [vmem:[%s206 + $0xe8] sm:$0xff] %v303
        %336 = vst [vmem:[%s206 + $0xf0] sm:$0xff] %v304
        %337 = vst [vmem:[%s206 + $0xf8] sm:$0xff] %v305
        %s338 = sand.u32 %s96, 1
        %s339 = scalar_lea.sflag [#allocation4], %s338
        %s340 = sand.u32 %s96, 1
        %s341 = smul.addr %s340, 256
        %s342 = scalar_lea.vmem [#allocation7], %s341
        // Predicated region
        $region37: #{tpu_custom_call.1} parent=27 // pred_check
          %p343 = pneg %p106
        $region38: #{tpu_custom_call.1} parent=27 // pred_check_branch
          %345 = sbr.rel (%p343) target = $region40
        $region39: #{tpu_custom_call.1} parent=27 // pred_region
          %s346 = smul.u32 32, %s24
          %348 = vsyncadd %s339, 0
          %s349 = smul.addr %s25, 32
          %s350 = sadd.s32 %s346, %s349
          %s351 = smul.addr %s350, 8
          %s352 = scalar_lea.hbm %s2, %s351
          %s353 = sshll.u32 %s342, 4
          %s354 = int_to_ptr.vmem [resolvable:$true] %s353
          %s355 = sshll.u32 %s352, 4
          %s356 = int_to_ptr.hbm [resolvable:$true] %s355
          %361 = dma.vmem_to_hbm [thread:$0]  %s354, 4096, %s356, %s339, 128, 128, 8
        $region40: #{tpu_custom_call.1} parent=27 // pred_fallthru
          _
      $region28: #{tpu_custom_call.1} parent=5 // pred_fallthru
        _
      %p362 = scmp.le.s32.totalorder 2, %s15
      // Predicated region
      $region41: #{tpu_custom_call.1} parent=5 // pred_check
        %p363 = pneg %p362
      $region42: #{tpu_custom_call.1} parent=5 // pred_check_branch
        %365 = sbr.rel (%p363) target = $region44
      $region43: #{tpu_custom_call.1} parent=5 // pred_region
        %s366 = ssub.s32 %s15, 2
        // Predicated region
        $region45: #{tpu_custom_call.1} parent=43 // pred_check
          %p367 = pneg %p112
        $region46: #{tpu_custom_call.1} parent=43 // pred_check_branch
          %369 = sbr.rel (%p367) target = $region48
        $region47: #{tpu_custom_call.1} parent=43 // pred_region
          %s370 = sand.u32 %s97, 1
          %s371 = scalar_lea.sflag [#allocation4], %s370
          %s372 = sand.u32 %s97, 1
          %s373 = smul.addr %s372, 256
          %s374 = scalar_lea.vmem [#allocation7], %s373
          %376 = dma.done %s371, 4096
        $region48: #{tpu_custom_call.1} parent=43 // pred_fallthru
          _
      $region44: #{tpu_custom_call.1} parent=5 // pred_fallthru
        _
    $region6: #{tpu_custom_call.1} parent=1 // loop_footer
      %s19 = sadd.s32 1, %s15
    $region7: #{tpu_custom_call.1} parent=1 // loop_footer_branch
      %14 = sbr.rel target = $region3
    $region8: #{tpu_custom_call.1} parent=1 // loop_exit
      _
    %377 = vsyncpa [#allocation3], 1
    %s378 = scalar_lea.sflag [#allocation3], 1
    %379 = vsyncpa %s378, 1
    %380 = vsyncpa [#allocation6], 1
    %381 = vsyncpa [#allocation4], 1
    %s382 = scalar_lea.sflag [#allocation4], 1
    %383 = vsyncpa %s382, 1

</llo_original>
